<compile_context>
chip_gen: v5e
topology: v5e:2x2
jax: 0.10.0
libtpu: 0.0.40
codegen_flags: <defaults>
</compile_context>

<pallas_src>
import functools

import jax
import jax.numpy as jnp
from jax.experimental import pallas as pl
from jax.experimental.pallas import tpu as pltpu


def _mlp_kernel(x_ref, m_ref, w1a_ref, w1b_ref, b1_ref, w2_ref, b2_ref,
                w3_ref, b3_ref, w4_ref, b4_ref, o_ref):
    """One batch tile in the packed layout: activations are (rows, P*features)."""
    cdt = w2_ref.dtype          # MXU-input (compute) dtype: float32 or bfloat16
    f32 = jnp.float32

    def elu(v):
        # nn.ELU(alpha=1): where(v > 0, v, exp(v) - 1).  exp rides the EUP; in
        # the bf16 path it is evaluated in bf16 (~2x EUP rate on v6e/v7x).
        # exp(v)-1 vs expm1 only differs for |v| ~ 0, far below tolerance.
        e = jnp.exp(v.astype(cdt)).astype(f32) - 1.0
        return jnp.where(v > 0.0, v, e)

    x = x_ref[...].astype(cdt)   # DMA'd as f32; cast in VMEM (cheap VPU op)
    m = m_ref[...].astype(cdt)

    # Layer 1: torch.cat((input, mask), dim=1) fused away by splitting W1's columns.
    h = elu(jnp.dot(x, w1a_ref[...], preferred_element_type=f32)
            + jnp.dot(m, w1b_ref[...], preferred_element_type=f32)
            + b1_ref[...])
    h = elu(jnp.dot(h.astype(cdt), w2_ref[...], preferred_element_type=f32)
            + b2_ref[...])
    h = elu(jnp.dot(h.astype(cdt), w3_ref[...], preferred_element_type=f32)
            + b3_ref[...])
    z = (jnp.dot(h.astype(cdt), w4_ref[...], preferred_element_type=f32)
         + b4_ref[...])                                         # (rows, P)
    # Exact sigmoid (output is tiny; keeps strict parity with torch.sigmoid).
    o_ref[...] = (1.0 / (1.0 + jnp.exp(-z))).astype(o_ref.dtype)


def _round_up(x, m):
    return (x + m - 1) // m * m


@functools.lru_cache(maxsize=1)
def _vmem_capacity_bytes():
    try:
        cap = int(pltpu.get_tpu_info().vmem_capacity_bytes)
        if cap > 0:
            return cap
    except Exception:
        pass
    return 64 << 20   # conservative fallback (v7x per-TensorCore VMEM)


@functools.partial(jax.jit, static_argnames=("bm", "compute_dtype"))
def linear_model_forward(inp, mask, params, *, bm=32768,
                         compute_dtype=jnp.float32):
    """Pallas equivalent of LinearModel.forward(input, mask).

    params = (w1, b1, w2, b2, w3, b3, w4, b4) in PyTorch layouts:
      w_i: (out, in), b_i: (out, 1).
    Returns a (B, 1) float32 array, matching the PyTorch module.
    """
    w1, b1, w2, b2, w3, b3, w4, b4 = params
    B, F = inp.shape
    assert mask.shape == (B, F)
    assert w1.shape[1] == 2 * F
    h1, h2, h3 = w1.shape[0], w2.shape[0], w3.shape[0]

    # ---- packed, lane-dense layout ------------------------------------------
    # P batch rows share one packed row: (B, F) -> (B/P, P*F).  For F | 128 the
    # reshape is free (contiguous row-major) and P*F == 128 -> lane-dense DMA.
    P = 128 // F if (F <= 128 and 128 % F == 0) else 1
    Bp = _round_up(B, P)
    x, m = inp, mask
    if Bp != B:
        # Tiny pad (< P rows) only for ragged batches; never pad to a tile multiple.
        pad = ((0, Bp - B), (0, 0))
        x = jnp.pad(x, pad)
        m = jnp.pad(m, pad)
    R = Bp // P
    x = x.reshape(R, P * F)
    m = m.reshape(R, P * F)

    # Block-diagonal replicated weights: every layer is a plain [M,K]@[K,N]
    # matmul on the packed layout (no transposes of the big activation tile).
    eye = jnp.eye(P, dtype=jnp.float32)

    def packw(w):                       # (out, in) -> (P*in, P*out)
        return jnp.kron(eye, w.T).astype(compute_dtype)

    def packb(b):                       # (out, 1) -> (1, P*out), kept f32
        return jnp.tile(b.reshape(1, -1), (1, P)).astype(jnp.float32)

    w1a_p, w1b_p = packw(w1[:, :F]), packw(w1[:, F:])
    w2_p, w3_p, w4_p = packw(w2), packw(w3), packw(w4)
    b1_p, b2_p, b3_p, b4_p = packb(b1), packb(b2), packb(b3), packb(b4)
    weights = (w1a_p, w1b_p, b1_p, w2_p, b2_p, w3_p, b3_p, w4_p, b4_p)

    # ---- batch tiling + generation-aware VMEM budget --------------------------
    in_lanes = _round_up(P * F, 128)          # lane-padded width of x/mask tiles
    out_lanes = _round_up(P, 128)             # lane-padded width of output tile

    def tile_vmem(rows):                      # double-buffered in/in/out tiles
        return 2 * _round_up(rows, 8) * (2 * in_lanes + out_lanes) * 4

    w_vmem = 2 * sum(_round_up(a.shape[0], 8) * _round_up(a.shape[1], 128)
                     * a.dtype.itemsize for a in weights)

    vmem_cap = _vmem_capacity_bytes()
    budget = int(vmem_cap * 0.7)              # headroom for compiler scratch
    rows_req = max(8, _round_up(max(bm, P) // P, 8))
    while tile_vmem(rows_req) + w_vmem > budget and rows_req > 8:
        rows_req = max(8, rows_req // 2)

    if R <= rows_req:
        rows, num_tiles = R, 1                # whole batch in one resident step
    else:
        # >= 4 grid steps so each v7x TensorCore double-buffers its input DMA;
        # on v5e/v6e (single TC) each step still moves megabytes -> negligible cost.
        num_tiles = max(4, pl.cdiv(R, rows_req))
        rows = _round_up(pl.cdiv(R, num_tiles), 8)
        num_tiles = pl.cdiv(R, rows)

    vmem_limit = min(int(vmem_cap * 0.9),
                     max(32 << 20, tile_vmem(rows) + w_vmem + (4 << 20)))

    # ---- pallas_call -----------------------------------------------------------
    def resident(a):    # full array, constant index_map -> stays resident in VMEM
        return pl.BlockSpec(a.shape, lambda i: (0, 0))

    macs = (2 * F) * h1 + h1 * h2 + h2 * h3 + h3 * 1
    cost = pl.CostEstimate(flops=2 * macs * Bp,
                           transcendentals=(h1 + h2 + h3 + 1) * Bp,
                           bytes_accessed=(2 * F + 1) * 4 * Bp)

    out_p = pl.pallas_call(
        _mlp_kernel,
        out_shape=jax.ShapeDtypeStruct((R, P), jnp.float32),
        grid_spec=pltpu.PrefetchScalarGridSpec(
            num_scalar_prefetch=0,
            grid=(num_tiles,),
            in_specs=[
                pl.BlockSpec((rows, P * F), lambda i: (i, 0)),   # packed input
                pl.BlockSpec((rows, P * F), lambda i: (i, 0)),   # packed mask
                resident(w1a_p), resident(w1b_p), resident(b1_p),
                resident(w2_p), resident(b2_p),
                resident(w3_p), resident(b3_p),
                resident(w4_p), resident(b4_p),
            ],
            out_specs=pl.BlockSpec((rows, P), lambda i: (i, 0)),
        ),
        compiler_params=pltpu.CompilerParams(
            dimension_semantics=("parallel",),
            vmem_limit_bytes=vmem_limit),
        cost_estimate=cost,
    )(x, m, *weights)

    # (R, P) row-major flatten gives batch order r*P + p; slice away pad rows.
    return out_p.reshape(Bp, 1)[:B]


def init_params(key, input_size, hidden_size):
    """Synthetic parameters with PyTorch nn.Linear layouts: W (out, in), b (out, 1)."""
    dims = [
        (input_size * 2, hidden_size),
        (hidden_size, hidden_size // 2),
        (hidden_size // 2, hidden_size // 3),
        (hidden_size // 3, 1),
    ]
    params = []
    for din, dout in dims:
        key, kw, kb = jax.random.split(key, 3)
        bound = 1.0 / (din ** 0.5)
        w = jax.random.uniform(kw, (dout, din), jnp.float32, -bound, bound)
        b = jax.random.uniform(kb, (dout, 1), jnp.float32, -bound, bound)
        params += [w, b]
    return tuple(params)


def reference_forward(inp, mask, params):
    """Plain-JAX reference: identical math to the PyTorch module."""
    w1, b1, w2, b2, w3, b3, w4, b4 = params
    elu = lambda v: jnp.where(v > 0, v, jnp.exp(v) - 1.0)
    h = jnp.concatenate([inp, mask], axis=1)
    h = elu(h @ w1.T + b1.T)
    h = elu(h @ w2.T + b2.T)
    h = elu(h @ w3.T + b3.T)
    return jax.nn.sigmoid(h @ w4.T + b4.T)


if __name__ == "__main__":
    input_size = 16
    hidden_size = 32
    batch = 256

    key = jax.random.PRNGKey(0)
    kx, km, kp = jax.random.split(key, 3)
    x = jax.random.normal(kx, (batch, input_size), jnp.float32)
    mask = jax.random.normal(km, (batch, input_size), jnp.float32)
    params = init_params(kp, input_size, hidden_size)

    expected = reference_forward(x, mask, params)

    # float32 compute path (default)
    out = jax.block_until_ready(linear_model_forward(x, mask, params))
    assert out.shape == (batch, 1)
    err = float(jnp.max(jnp.abs(out - expected)))
    assert err < 2e-3, f"f32 path max abs err {err}"

    # bf16 compute path (bf16 MXU + bf16 EUP on v6e/v7x; f32 accumulation)
    out_bf16 = jax.block_until_ready(
        linear_model_forward(x, mask, params, compute_dtype=jnp.bfloat16))
    err_bf16 = float(jnp.max(jnp.abs(out_bf16 - expected)))
    assert err_bf16 < 5e-2, f"bf16 path max abs err {err_bf16}"

    # ragged batch (not a multiple of the packing factor) -> tiny pad + slice path
    out_r = jax.block_until_ready(linear_model_forward(x[:50], mask[:50], params))
    assert out_r.shape == (50, 1)
    err_r = float(jnp.max(jnp.abs(out_r - expected[:50])))
    assert err_r < 2e-3, f"ragged path max abs err {err_r}"

    # multi-tile grid path (4 "parallel" steps) with a small explicit tile
    kx2, km2 = jax.random.split(jax.random.PRNGKey(1))
    big = 4096
    xb = jax.random.normal(kx2, (big, input_size), jnp.float32)
    mb = jax.random.normal(km2, (big, input_size), jnp.float32)
    out_b = jax.block_until_ready(linear_model_forward(xb, mb, params, bm=1024))
    err_b = float(jnp.max(jnp.abs(out_b - reference_forward(xb, mb, params))))
    assert err_b < 2e-3, f"multi-tile path max abs err {err_b}"

    print("KERNEL_OK")
</pallas_src>

<mosaic_0001>
module attributes {stable_mosaic.version = 11 : i64} {
  func.func @_mlp_kernel(%arg0: i32, %arg1: memref<32x128xf32, #tpu.memory_space<vmem>>, %arg2: memref<32x128xf32, #tpu.memory_space<vmem>>, %arg3: memref<128x256xf32, #tpu.memory_space<vmem>>, %arg4: memref<128x256xf32, #tpu.memory_space<vmem>>, %arg5: memref<1x256xf32, #tpu.memory_space<vmem>>, %arg6: memref<256x128xf32, #tpu.memory_space<vmem>>, %arg7: memref<1x128xf32, #tpu.memory_space<vmem>>, %arg8: memref<128x80xf32, #tpu.memory_space<vmem>>, %arg9: memref<1x80xf32, #tpu.memory_space<vmem>>, %arg10: memref<80x8xf32, #tpu.memory_space<vmem>>, %arg11: memref<1x8xf32, #tpu.memory_space<vmem>>, %arg12: memref<32x8xf32, #tpu.memory_space<vmem>>) attributes {dimension_semantics = [#tpu.dimension_semantics<parallel>], iteration_bounds = array<i64: 1>, scalar_prefetch = 0 : i64, scratch_operands = 0 : i64, tpu.core_type = #tpu.core_type<tc>, window_params = [{transform_indices = @transform_0, window_bounds = array<i64: 32, 128>}, {transform_indices = @transform_1, window_bounds = array<i64: 32, 128>}, {pipeline_mode = #tpu.pipeline_mode<synchronous>, transform_indices = @transform_2, window_bounds = array<i64: 128, 256>}, {pipeline_mode = #tpu.pipeline_mode<synchronous>, transform_indices = @transform_3, window_bounds = array<i64: 128, 256>}, {pipeline_mode = #tpu.pipeline_mode<synchronous>, transform_indices = @transform_4, window_bounds = array<i64: 1, 256>}, {pipeline_mode = #tpu.pipeline_mode<synchronous>, transform_indices = @transform_5, window_bounds = array<i64: 256, 128>}, {pipeline_mode = #tpu.pipeline_mode<synchronous>, transform_indices = @transform_6, window_bounds = array<i64: 1, 128>}, {pipeline_mode = #tpu.pipeline_mode<synchronous>, transform_indices = @transform_7, window_bounds = array<i64: 128, 80>}, {pipeline_mode = #tpu.pipeline_mode<synchronous>, transform_indices = @transform_8, window_bounds = array<i64: 1, 80>}, {pipeline_mode = #tpu.pipeline_mode<synchronous>, transform_indices = @transform_9, window_bounds = array<i64: 80, 8>}, {pipeline_mode = #tpu.pipeline_mode<synchronous>, transform_indices = @transform_10, window_bounds = array<i64: 1, 8>}, {transform_indices = @transform_11, window_bounds = array<i64: 32, 8>}]} {
    %c0 = arith.constant 0 : index
    %c0_0 = arith.constant 0 : index
    %0 = vector.load %arg1[%c0, %c0_0] : memref<32x128xf32, #tpu.memory_space<vmem>>, vector<32x128xf32>
    %c0_1 = arith.constant 0 : index
    %c0_2 = arith.constant 0 : index
    %1 = vector.load %arg2[%c0_1, %c0_2] : memref<32x128xf32, #tpu.memory_space<vmem>>, vector<32x128xf32>
    %c0_3 = arith.constant 0 : index
    %c0_4 = arith.constant 0 : index
    %2 = vector.load %arg3[%c0_3, %c0_4] : memref<128x256xf32, #tpu.memory_space<vmem>>, vector<128x256xf32>
    %cst = arith.constant dense<0.000000e+00> : vector<32x256xf32>
    %3 = tpu.matmul %0, %2, %cst {dimension_numbers = #tpu.dot_dimension_numbers<[1], [0], [0], [1], [0, 0, 1, 1], [], []>} : vector<32x128xf32>, vector<128x256xf32>, vector<32x256xf32> -> vector<32x256xf32>
    %c0_5 = arith.constant 0 : index
    %c0_6 = arith.constant 0 : index
    %4 = vector.load %arg4[%c0_5, %c0_6] : memref<128x256xf32, #tpu.memory_space<vmem>>, vector<128x256xf32>
    %cst_7 = arith.constant dense<0.000000e+00> : vector<32x256xf32>
    %5 = tpu.matmul %1, %4, %cst_7 {dimension_numbers = #tpu.dot_dimension_numbers<[1], [0], [0], [1], [0, 0, 1, 1], [], []>} : vector<32x128xf32>, vector<128x256xf32>, vector<32x256xf32> -> vector<32x256xf32>
    %6 = arith.addf %3, %5 : vector<32x256xf32>
    %c0_8 = arith.constant 0 : index
    %c0_9 = arith.constant 0 : index
    %7 = vector.load %arg5[%c0_8, %c0_9] : memref<1x256xf32, #tpu.memory_space<vmem>>, vector<1x256xf32>
    %8 = vector.broadcast %7 : vector<1x256xf32> to vector<32x256xf32>
    %9 = arith.addf %6, %8 : vector<32x256xf32>
    %10 = math.exp %9 : vector<32x256xf32>
    %cst_10 = arith.constant 1.000000e+00 : f32
    %11 = vector.broadcast %cst_10 : f32 to vector<32x256xf32>
    %12 = arith.subf %10, %11 : vector<32x256xf32>
    %cst_11 = arith.constant 0.000000e+00 : f32
    %13 = vector.broadcast %cst_11 : f32 to vector<32x256xf32>
    %14 = arith.cmpf ogt, %9, %13 : vector<32x256xf32>
    %15 = arith.select %14, %9, %12 : vector<32x256xi1>, vector<32x256xf32>
    %c0_12 = arith.constant 0 : index
    %c0_13 = arith.constant 0 : index
    %16 = vector.load %arg6[%c0_12, %c0_13] : memref<256x128xf32, #tpu.memory_space<vmem>>, vector<256x128xf32>
    %cst_14 = arith.constant dense<0.000000e+00> : vector<32x128xf32>
    %17 = tpu.matmul %15, %16, %cst_14 {dimension_numbers = #tpu.dot_dimension_numbers<[1], [0], [0], [1], [0, 0, 1, 1], [], []>} : vector<32x256xf32>, vector<256x128xf32>, vector<32x128xf32> -> vector<32x128xf32>
    %c0_15 = arith.constant 0 : index
    %c0_16 = arith.constant 0 : index
    %18 = vector.load %arg7[%c0_15, %c0_16] : memref<1x128xf32, #tpu.memory_space<vmem>>, vector<1x128xf32>
    %19 = vector.broadcast %18 : vector<1x128xf32> to vector<32x128xf32>
    %20 = arith.addf %17, %19 : vector<32x128xf32>
    %21 = math.exp %20 : vector<32x128xf32>
    %cst_17 = arith.constant 1.000000e+00 : f32
    %22 = vector.broadcast %cst_17 : f32 to vector<32x128xf32>
    %23 = arith.subf %21, %22 : vector<32x128xf32>
    %cst_18 = arith.constant 0.000000e+00 : f32
    %24 = vector.broadcast %cst_18 : f32 to vector<32x128xf32>
    %25 = arith.cmpf ogt, %20, %24 : vector<32x128xf32>
    %26 = arith.select %25, %20, %23 : vector<32x128xi1>, vector<32x128xf32>
    %c0_19 = arith.constant 0 : index
    %c0_20 = arith.constant 0 : index
    %27 = vector.load %arg8[%c0_19, %c0_20] : memref<128x80xf32, #tpu.memory_space<vmem>>, vector<128x80xf32>
    %cst_21 = arith.constant dense<0.000000e+00> : vector<32x80xf32>
    %28 = tpu.matmul %26, %27, %cst_21 {dimension_numbers = #tpu.dot_dimension_numbers<[1], [0], [0], [1], [0, 0, 1, 1], [], []>} : vector<32x128xf32>, vector<128x80xf32>, vector<32x80xf32> -> vector<32x80xf32>
    %c0_22 = arith.constant 0 : index
    %c0_23 = arith.constant 0 : index
    %29 = vector.load %arg9[%c0_22, %c0_23] : memref<1x80xf32, #tpu.memory_space<vmem>>, vector<1x80xf32>
    %30 = vector.broadcast %29 : vector<1x80xf32> to vector<32x80xf32>
    %31 = arith.addf %28, %30 : vector<32x80xf32>
    %32 = math.exp %31 : vector<32x80xf32>
    %cst_24 = arith.constant 1.000000e+00 : f32
    %33 = vector.broadcast %cst_24 : f32 to vector<32x80xf32>
    %34 = arith.subf %32, %33 : vector<32x80xf32>
    %cst_25 = arith.constant 0.000000e+00 : f32
    %35 = vector.broadcast %cst_25 : f32 to vector<32x80xf32>
    %36 = arith.cmpf ogt, %31, %35 : vector<32x80xf32>
    %37 = arith.select %36, %31, %34 : vector<32x80xi1>, vector<32x80xf32>
    %c0_26 = arith.constant 0 : index
    %c0_27 = arith.constant 0 : index
    %38 = vector.load %arg10[%c0_26, %c0_27] : memref<80x8xf32, #tpu.memory_space<vmem>>, vector<80x8xf32>
    %cst_28 = arith.constant dense<0.000000e+00> : vector<32x8xf32>
    %39 = tpu.matmul %37, %38, %cst_28 {dimension_numbers = #tpu.dot_dimension_numbers<[1], [0], [0], [1], [0, 0, 1, 1], [], []>} : vector<32x80xf32>, vector<80x8xf32>, vector<32x8xf32> -> vector<32x8xf32>
    %c0_29 = arith.constant 0 : index
    %c0_30 = arith.constant 0 : index
    %40 = vector.load %arg11[%c0_29, %c0_30] : memref<1x8xf32, #tpu.memory_space<vmem>>, vector<1x8xf32>
    %41 = vector.broadcast %40 : vector<1x8xf32> to vector<32x8xf32>
    %42 = arith.addf %39, %41 : vector<32x8xf32>
    %cst_31 = arith.constant 0.000000e+00 : f32
    %43 = vector.broadcast %cst_31 : f32 to vector<32x8xf32>
    %44 = arith.subf %43, %42 : vector<32x8xf32>
    %45 = math.exp %44 : vector<32x8xf32>
    %cst_32 = arith.constant 1.000000e+00 : f32
    %46 = vector.broadcast %cst_32 : f32 to vector<32x8xf32>
    %47 = arith.addf %46, %45 : vector<32x8xf32>
    %cst_33 = arith.constant 1.000000e+00 : f32
    %48 = vector.broadcast %cst_33 : f32 to vector<32x8xf32>
    %49 = arith.divf %48, %47 : vector<32x8xf32>
    %c0_34 = arith.constant 0 : index
    %c0_35 = arith.constant 0 : index
    %50 = vector.load %arg12[%c0_34, %c0_35] : memref<32x8xf32, #tpu.memory_space<vmem>>, vector<32x8xf32>
    tpu.vector_store %arg12[%c0_34, %c0_35], %49 {strides = array<i32>} : memref<32x8xf32, #tpu.memory_space<vmem>>, vector<32x8xf32>,
    return
  }
  func.func @transform_0(%arg0: i32) -> (i32, i32) {
    %c0_i32 = arith.constant 0 : i32
    %c0_i32_0 = arith.constant 0 : i32
    return %arg0, %c0_i32 : i32, i32
  }
  func.func @transform_1(%arg0: i32) -> (i32, i32) {
    %c0_i32 = arith.constant 0 : i32
    %c0_i32_0 = arith.constant 0 : i32
    return %arg0, %c0_i32 : i32, i32
  }
  func.func @transform_2(%arg0: i32) -> (i32, i32) {
    %c0_i32 = arith.constant 0 : i32
    %c0_i32_0 = arith.constant 0 : i32
    %c0_i32_1 = arith.constant 0 : i32
    return %c0_i32, %c0_i32_0 : i32, i32
  }
  func.func @transform_3(%arg0: i32) -> (i32, i32) {
    %c0_i32 = arith.constant 0 : i32
    %c0_i32_0 = arith.constant 0 : i32
    %c0_i32_1 = arith.constant 0 : i32
    return %c0_i32, %c0_i32_0 : i32, i32
  }
  func.func @transform_4(%arg0: i32) -> (i32, i32) {
    %c0_i32 = arith.constant 0 : i32
    %c0_i32_0 = arith.constant 0 : i32
    %c0_i32_1 = arith.constant 0 : i32
    return %c0_i32, %c0_i32_0 : i32, i32
  }
  func.func @transform_5(%arg0: i32) -> (i32, i32) {
    %c0_i32 = arith.constant 0 : i32
    %c0_i32_0 = arith.constant 0 : i32
    %c0_i32_1 = arith.constant 0 : i32
    return %c0_i32, %c0_i32_0 : i32, i32
  }
  func.func @transform_6(%arg0: i32) -> (i32, i32) {
    %c0_i32 = arith.constant 0 : i32
    %c0_i32_0 = arith.constant 0 : i32
    %c0_i32_1 = arith.constant 0 : i32
    return %c0_i32, %c0_i32_0 : i32, i32
  }
  func.func @transform_7(%arg0: i32) -> (i32, i32) {
    %c0_i32 = arith.constant 0 : i32
    %c0_i32_0 = arith.constant 0 : i32
    %c0_i32_1 = arith.constant 0 : i32
    return %c0_i32, %c0_i32_0 : i32, i32
  }
  func.func @transform_8(%arg0: i32) -> (i32, i32) {
    %c0_i32 = arith.constant 0 : i32
    %c0_i32_0 = arith.constant 0 : i32
    %c0_i32_1 = arith.constant 0 : i32
    return %c0_i32, %c0_i32_0 : i32, i32
  }
  func.func @transform_9(%arg0: i32) -> (i32, i32) {
    %c0_i32 = arith.constant 0 : i32
    %c0_i32_0 = arith.constant 0 : i32
    %c0_i32_1 = arith.constant 0 : i32
    return %c0_i32, %c0_i32_0 : i32, i32
  }
  func.func @transform_10(%arg0: i32) -> (i32, i32) {
    %c0_i32 = arith.constant 0 : i32
    %c0_i32_0 = arith.constant 0 : i32
    %c0_i32_1 = arith.constant 0 : i32
    return %c0_i32, %c0_i32_0 : i32, i32
  }
  func.func @transform_11(%arg0: i32) -> (i32, i32) {
    %c0_i32 = arith.constant 0 : i32
    %c0_i32_0 = arith.constant 0 : i32
    return %arg0, %c0_i32 : i32, i32
  }
}

</mosaic_0001>

<llo_original>
// kernel: linear_model_forward.1
$region0: #{linear_model_forward.1}
  #allocation0 [shape = 'u32[]', space=smem, size = 0x4, offset = 0x4, fixed_abs, tag = 'smem constant byte address 0x4 - core index']
  #allocation1 [shape = 'u32[72,128]{1,0:T(1,128)}', space=vmem, size = 0x9000, scoped, tag = 'internal scratch']
  %s0 = inlined_call_operand.vmem [shape: f32[32,128], index: 0, kind: input, shape index: {}]
  %s1 = inlined_call_operand.vmem [shape: f32[32,128], index: 1, kind: input, shape index: {}]
  %s2 = inlined_call_operand.vmem [shape: f32[128,256], index: 2, kind: input, shape index: {}]
  %s3 = inlined_call_operand.vmem [shape: f32[128,256], index: 3, kind: input, shape index: {}]
  %s4 = inlined_call_operand.vmem [shape: f32[1,256], index: 4, kind: input, shape index: {}]
  %s5 = inlined_call_operand.vmem [shape: f32[256,128], index: 5, kind: input, shape index: {}]
  %s6 = inlined_call_operand.vmem [shape: f32[1,128], index: 6, kind: input, shape index: {}]
  %s7 = inlined_call_operand.vmem [shape: f32[128,80], index: 7, kind: input, shape index: {}]
  %s8 = inlined_call_operand.vmem [shape: f32[1,80], index: 8, kind: input, shape index: {}]
  %s9 = inlined_call_operand.vmem [shape: f32[80,8], index: 9, kind: input, shape index: {}]
  %s10 = inlined_call_operand.vmem [shape: f32[1,8], index: 10, kind: input, shape index: {}]
  %s11 = inlined_call_operand.vmem [shape: f32[32,8], index: 11, kind: output, shape index: {}]
  %s12 = sld [smem:[#allocation0]]
  $region54: #{linear_model_forward.1} parent=0
    _
  %s14 = ssub.s32 1, %s12
  %s15 = scalar_select 0, %s14, %s12
  // Predicated region
  $region2: #{linear_model_forward.1} parent=0 // pred_check
    _
  $region3: #{linear_model_forward.1} parent=0 // pred_check_branch
    %17 = sbr.rel (0) target = $region5
  $region4: #{linear_model_forward.1} parent=0 // pred_region
    _
  $region5: #{linear_model_forward.1} parent=0 // pred_fallthru
    _
  // Predicated region
  $region6: #{linear_model_forward.1} parent=0 // pred_check
    _
  $region7: #{linear_model_forward.1} parent=0 // pred_check_branch
    %19 = sbr.rel (0) target = $region9
  $region8: #{linear_model_forward.1} parent=0 // pred_region
    _
  $region9: #{linear_model_forward.1} parent=0 // pred_fallthru
    _
  // Predicated region
  $region10: #{linear_model_forward.1} parent=0 // pred_check
    _
  $region11: #{linear_model_forward.1} parent=0 // pred_check_branch
    %21 = sbr.rel (0) target = $region13
  $region12: #{linear_model_forward.1} parent=0 // pred_region
    _
  $region13: #{linear_model_forward.1} parent=0 // pred_fallthru
    _
  // Predicated region
  $region14: #{linear_model_forward.1} parent=0 // pred_check
    _
  $region15: #{linear_model_forward.1} parent=0 // pred_check_branch
    %23 = sbr.rel (0) target = $region17
  $region16: #{linear_model_forward.1} parent=0 // pred_region
    _
  $region17: #{linear_model_forward.1} parent=0 // pred_fallthru
    _
  // Predicated region
  $region18: #{linear_model_forward.1} parent=0 // pred_check
    _
  $region19: #{linear_model_forward.1} parent=0 // pred_check_branch
    %25 = sbr.rel (0) target = $region21
  $region20: #{linear_model_forward.1} parent=0 // pred_region
    _
  $region21: #{linear_model_forward.1} parent=0 // pred_fallthru
    _
  // Predicated region
  $region22: #{linear_model_forward.1} parent=0 // pred_check
    _
  $region23: #{linear_model_forward.1} parent=0 // pred_check_branch
    %27 = sbr.rel (0) target = $region25
  $region24: #{linear_model_forward.1} parent=0 // pred_region
    _
  $region25: #{linear_model_forward.1} parent=0 // pred_fallthru
    _
  // Predicated region
  $region26: #{linear_model_forward.1} parent=0 // pred_check
    _
  $region27: #{linear_model_forward.1} parent=0 // pred_check_branch
    %29 = sbr.rel (0) target = $region29
  $region28: #{linear_model_forward.1} parent=0 // pred_region
    _
  $region29: #{linear_model_forward.1} parent=0 // pred_fallthru
    _
  // Predicated region
  $region30: #{linear_model_forward.1} parent=0 // pred_check
    _
  $region31: #{linear_model_forward.1} parent=0 // pred_check_branch
    %31 = sbr.rel (0) target = $region33
  $region32: #{linear_model_forward.1} parent=0 // pred_region
    _
  $region33: #{linear_model_forward.1} parent=0 // pred_fallthru
    _
  // Predicated region
  $region34: #{linear_model_forward.1} parent=0 // pred_check
    _
  $region35: #{linear_model_forward.1} parent=0 // pred_check_branch
    %33 = sbr.rel (0) target = $region37
  $region36: #{linear_model_forward.1} parent=0 // pred_region
    _
  $region37: #{linear_model_forward.1} parent=0 // pred_fallthru
    _
  // Predicated region
  $region38: #{linear_model_forward.1} parent=0 // pred_check
    _
  $region39: #{linear_model_forward.1} parent=0 // pred_check_branch
    %35 = sbr.rel (0) target = $region41
  $region40: #{linear_model_forward.1} parent=0 // pred_region
    _
  $region41: #{linear_model_forward.1} parent=0 // pred_fallthru
    _
  // Predicated region
  $region42: #{linear_model_forward.1} parent=0 // pred_check
    _
  $region43: #{linear_model_forward.1} parent=0 // pred_check_branch
    %37 = sbr.rel (0) target = $region45
  $region44: #{linear_model_forward.1} parent=0 // pred_region
    _
  $region45: #{linear_model_forward.1} parent=0 // pred_fallthru
    _
  %v38 = vld [vmem:[%s0] sm:$0xff]
  %v39 = vld [vmem:[%s0 + $0x8] sm:$0xff]
  %v40 = vld [vmem:[%s0 + $0x10] sm:$0xff]
  %v41 = vld [vmem:[%s0 + $0x18] sm:$0xff]
  %v42 = vld [vmem:[%s1] sm:$0xff]
  %v43 = vld [vmem:[%s1 + $0x8] sm:$0xff]
  %v44 = vld [vmem:[%s1 + $0x10] sm:$0xff]
  %v45 = vld [vmem:[%s1 + $0x18] sm:$0xff]
  %v46 = vld [vmem:[%s2] sm:$0xff]
  %v47 = vld [vmem:[%s2 + $0x8] sm:$0xff]
  %v48 = vld [vmem:[%s2 + $0x10] sm:$0xff]
  %v49 = vld [vmem:[%s2 + $0x18] sm:$0xff]
  %v50 = vld [vmem:[%s2 + $0x20] sm:$0xff]
  %v51 = vld [vmem:[%s2 + $0x28] sm:$0xff]
  %v52 = vld [vmem:[%s2 + $0x30] sm:$0xff]
  %v53 = vld [vmem:[%s2 + $0x38] sm:$0xff]
  %v54 = vld [vmem:[%s2 + $0x40] sm:$0xff]
  %v55 = vld [vmem:[%s2 + $0x48] sm:$0xff]
  %v56 = vld [vmem:[%s2 + $0x50] sm:$0xff]
  %v57 = vld [vmem:[%s2 + $0x58] sm:$0xff]
  %v58 = vld [vmem:[%s2 + $0x60] sm:$0xff]
  %v59 = vld [vmem:[%s2 + $0x68] sm:$0xff]
  %v60 = vld [vmem:[%s2 + $0x70] sm:$0xff]
  %v61 = vld [vmem:[%s2 + $0x78] sm:$0xff]
  %v62 = vld [vmem:[%s2 + $0x80] sm:$0xff]
  %v63 = vld [vmem:[%s2 + $0x88] sm:$0xff]
  %v64 = vld [vmem:[%s2 + $0x90] sm:$0xff]
  %v65 = vld [vmem:[%s2 + $0x98] sm:$0xff]
  %v66 = vld [vmem:[%s2 + $0xa0] sm:$0xff]
  %v67 = vld [vmem:[%s2 + $0xa8] sm:$0xff]
  %v68 = vld [vmem:[%s2 + $0xb0] sm:$0xff]
  %v69 = vld [vmem:[%s2 + $0xb8] sm:$0xff]
  %v70 = vld [vmem:[%s2 + $0xc0] sm:$0xff]
  %v71 = vld [vmem:[%s2 + $0xc8] sm:$0xff]
  %v72 = vld [vmem:[%s2 + $0xd0] sm:$0xff]
  %v73 = vld [vmem:[%s2 + $0xd8] sm:$0xff]
  %v74 = vld [vmem:[%s2 + $0xe0] sm:$0xff]
  %v75 = vld [vmem:[%s2 + $0xe8] sm:$0xff]
  %v76 = vld [vmem:[%s2 + $0xf0] sm:$0xff]
  %v77 = vld [vmem:[%s2 + $0xf8] sm:$0xff]
  %v78 = vld [vmem:[%s3] sm:$0xff]
  %v79 = vld [vmem:[%s3 + $0x8] sm:$0xff]
  %v80 = vld [vmem:[%s3 + $0x10] sm:$0xff]
  %v81 = vld [vmem:[%s3 + $0x18] sm:$0xff]
  %v82 = vld [vmem:[%s3 + $0x20] sm:$0xff]
  %v83 = vld [vmem:[%s3 + $0x28] sm:$0xff]
  %v84 = vld [vmem:[%s3 + $0x30] sm:$0xff]
  %v85 = vld [vmem:[%s3 + $0x38] sm:$0xff]
  %v86 = vld [vmem:[%s3 + $0x40] sm:$0xff]
  %v87 = vld [vmem:[%s3 + $0x48] sm:$0xff]
  %v88 = vld [vmem:[%s3 + $0x50] sm:$0xff]
  %v89 = vld [vmem:[%s3 + $0x58] sm:$0xff]
  %v90 = vld [vmem:[%s3 + $0x60] sm:$0xff]
  %v91 = vld [vmem:[%s3 + $0x68] sm:$0xff]
  %v92 = vld [vmem:[%s3 + $0x70] sm:$0xff]
  %v93 = vld [vmem:[%s3 + $0x78] sm:$0xff]
  %v94 = vld [vmem:[%s3 + $0x80] sm:$0xff]
  %v95 = vld [vmem:[%s3 + $0x88] sm:$0xff]
  %v96 = vld [vmem:[%s3 + $0x90] sm:$0xff]
  %v97 = vld [vmem:[%s3 + $0x98] sm:$0xff]
  %v98 = vld [vmem:[%s3 + $0xa0] sm:$0xff]
  %v99 = vld [vmem:[%s3 + $0xa8] sm:$0xff]
  %v100 = vld [vmem:[%s3 + $0xb0] sm:$0xff]
  %v101 = vld [vmem:[%s3 + $0xb8] sm:$0xff]
  %v102 = vld [vmem:[%s3 + $0xc0] sm:$0xff]
  %v103 = vld [vmem:[%s3 + $0xc8] sm:$0xff]
  %v104 = vld [vmem:[%s3 + $0xd0] sm:$0xff]
  %v105 = vld [vmem:[%s3 + $0xd8] sm:$0xff]
  %v106 = vld [vmem:[%s3 + $0xe0] sm:$0xff]
  %v107 = vld [vmem:[%s3 + $0xe8] sm:$0xff]
  %v108 = vld [vmem:[%s3 + $0xf0] sm:$0xff]
  %v109 = vld [vmem:[%s3 + $0xf8] sm:$0xff]
  %110 = vmatpush.msra.mxu0 %v108
  %111 = vmatpush.msra.mxu0 %v106
  %112 = vmatpush.msra.mxu0 %v104
  %113 = vmatpush.msra.mxu0 %v102
  %114 = vmatpush.msra.mxu0 %v100
  %115 = vmatpush.msra.mxu0 %v98
  %116 = vmatpush.msra.mxu0 %v96
  %117 = vmatpush.msra.mxu0 %v94
  %118 = vmatpush.msra.mxu0 %v92
  %119 = vmatpush.msra.mxu0 %v90
  %120 = vmatpush.msra.mxu0 %v88
  %121 = vmatpush.msra.mxu0 %v86
  %122 = vmatpush.msra.mxu0 %v84
  %123 = vmatpush.msra.mxu0 %v82
  %124 = vmatpush.msra.mxu0 %v80
  %125 = vmatpush.msra.mxu0 %v78
  %126 = vmatmul.f32.gmra.mxu0 %v42
  %v127 = vpop.f32.mrf.mxu0
  %v128 = vadd.f32 0.0, %v127
  %129 = vmatmul.f32.gmra.mxu0 %v43
  %v130 = vpop.f32.mrf.mxu0
  %v131 = vadd.f32 0.0, %v130
  %132 = vmatmul.f32.gmra.mxu0 %v44
  %v133 = vpop.f32.mrf.mxu0
  %v134 = vadd.f32 0.0, %v133
  %135 = vmatmul.f32.gmra.mxu0 %v45
  %v136 = vpop.f32.mrf.mxu0
  %v137 = vadd.f32 0.0, %v136
  %138 = vdwg.mxu0
  %139 = vmatpush.msra.mxu0 %v109
  %140 = vmatpush.msra.mxu0 %v107
  %141 = vmatpush.msra.mxu0 %v105
  %142 = vmatpush.msra.mxu0 %v103
  %143 = vmatpush.msra.mxu0 %v101
  %144 = vmatpush.msra.mxu0 %v99
  %145 = vmatpush.msra.mxu0 %v97
  %146 = vmatpush.msra.mxu0 %v95
  %147 = vmatpush.msra.mxu0 %v93
  %148 = vmatpush.msra.mxu0 %v91
  %149 = vmatpush.msra.mxu0 %v89
  %150 = vmatpush.msra.mxu0 %v87
  %151 = vmatpush.msra.mxu0 %v85
  %152 = vmatpush.msra.mxu0 %v83
  %153 = vmatpush.msra.mxu0 %v81
  %154 = vmatpush.msra.mxu0 %v79
  %155 = vmatmul.f32.gmra.mxu0 %v42
  %v156 = vpop.f32.mrf.mxu0
  %v157 = vadd.f32 0.0, %v156
  %158 = vmatmul.f32.gmra.mxu0 %v43
  %v159 = vpop.f32.mrf.mxu0
  %v160 = vadd.f32 0.0, %v159
  %161 = vmatmul.f32.gmra.mxu0 %v44
  %v162 = vpop.f32.mrf.mxu0
  %v163 = vadd.f32 0.0, %v162
  %164 = vmatmul.f32.gmra.mxu0 %v45
  %v165 = vpop.f32.mrf.mxu0
  %v166 = vadd.f32 0.0, %v165
  %167 = vdwg.mxu0
  %168 = vmatpush.msra.mxu0 %v76
  %169 = vmatpush.msra.mxu0 %v74
  %170 = vmatpush.msra.mxu0 %v72
  %171 = vmatpush.msra.mxu0 %v70
  %172 = vmatpush.msra.mxu0 %v68
  %173 = vmatpush.msra.mxu0 %v66
  %174 = vmatpush.msra.mxu0 %v64
  %175 = vmatpush.msra.mxu0 %v62
  %176 = vmatpush.msra.mxu0 %v60
  %177 = vmatpush.msra.mxu0 %v58
  %178 = vmatpush.msra.mxu0 %v56
  %179 = vmatpush.msra.mxu0 %v54
  %180 = vmatpush.msra.mxu0 %v52
  %181 = vmatpush.msra.mxu0 %v50
  %182 = vmatpush.msra.mxu0 %v48
  %183 = vmatpush.msra.mxu0 %v46
  %184 = vmatmul.f32.gmra.mxu0 %v38
  %v185 = vpop.f32.mrf.mxu0
  %v186 = vadd.f32 %v128, %v185
  %187 = vmatmul.f32.gmra.mxu0 %v39
  %v188 = vpop.f32.mrf.mxu0
  %v189 = vadd.f32 %v131, %v188
  %190 = vmatmul.f32.gmra.mxu0 %v40
  %v191 = vpop.f32.mrf.mxu0
  %v192 = vadd.f32 %v134, %v191
  %193 = vmatmul.f32.gmra.mxu0 %v41
  %v194 = vpop.f32.mrf.mxu0
  %v195 = vadd.f32 %v137, %v194
  %196 = vdwg.mxu0
  %197 = vmatpush.msra.mxu0 %v77
  %198 = vmatpush.msra.mxu0 %v75
  %199 = vmatpush.msra.mxu0 %v73
  %200 = vmatpush.msra.mxu0 %v71
  %201 = vmatpush.msra.mxu0 %v69
  %202 = vmatpush.msra.mxu0 %v67
  %203 = vmatpush.msra.mxu0 %v65
  %204 = vmatpush.msra.mxu0 %v63
  %205 = vmatpush.msra.mxu0 %v61
  %206 = vmatpush.msra.mxu0 %v59
  %207 = vmatpush.msra.mxu0 %v57
  %208 = vmatpush.msra.mxu0 %v55
  %209 = vmatpush.msra.mxu0 %v53
  %210 = vmatpush.msra.mxu0 %v51
  %211 = vmatpush.msra.mxu0 %v49
  %212 = vmatpush.msra.mxu0 %v47
  %213 = vmatmul.f32.gmra.mxu0 %v38
  %v214 = vpop.f32.mrf.mxu0
  %v215 = vadd.f32 %v157, %v214
  %216 = vmatmul.f32.gmra.mxu0 %v39
  %v217 = vpop.f32.mrf.mxu0
  %v218 = vadd.f32 %v160, %v217
  %219 = vmatmul.f32.gmra.mxu0 %v40
  %v220 = vpop.f32.mrf.mxu0
  %v221 = vadd.f32 %v163, %v220
  %222 = vmatmul.f32.gmra.mxu0 %v41
  %v223 = vpop.f32.mrf.mxu0
  %v224 = vadd.f32 %v166, %v223
  %225 = vdwg.mxu0
  %v226 = vld [vmem:[%s4] sm:$0x3]
  %v228 = vperm.slane %v226, 0
  %v229 = vperm.slane %v226, 1
  %v232 = vadd.f32 %v186, %v228
  %v233 = vadd.f32 %v215, %v229
  %v234 = vadd.f32 %v189, %v228
  %v235 = vadd.f32 %v218, %v229
  %v236 = vadd.f32 %v192, %v228
  %v237 = vadd.f32 %v221, %v229
  %v238 = vadd.f32 %v195, %v228
  %v239 = vadd.f32 %v224, %v229
  %v240 = vmul.f32 %v232, 1.442695
  %v241 = vpow.pop %v240
  %v242 = vmul.f32 %v233, 1.442695
  %v243 = vpow.pop %v242
  %v244 = vmul.f32 %v234, 1.442695
  %v245 = vpow.pop %v244
  %v246 = vmul.f32 %v235, 1.442695
  %v247 = vpow.pop %v246
  %v248 = vmul.f32 %v236, 1.442695
  %v249 = vpow.pop %v248
  %v250 = vmul.f32 %v237, 1.442695
  %v251 = vpow.pop %v250
  %v252 = vmul.f32 %v238, 1.442695
  %v253 = vpow.pop %v252
  %v254 = vmul.f32 %v239, 1.442695
  %v255 = vpow.pop %v254
  %v256 = vsub.f32 %v241, 1.0
  %v257 = vsub.f32 %v243, 1.0
  %v258 = vsub.f32 %v245, 1.0
  %v259 = vsub.f32 %v247, 1.0
  %v260 = vsub.f32 %v249, 1.0
  %v261 = vsub.f32 %v251, 1.0
  %v262 = vsub.f32 %v253, 1.0
  %v263 = vsub.f32 %v255, 1.0
  %vm264 = vcmp.gt.f32.partialorder %v232, 0.0
  %vm265 = vcmp.gt.f32.partialorder %v233, 0.0
  %vm266 = vcmp.gt.f32.partialorder %v234, 0.0
  %vm267 = vcmp.gt.f32.partialorder %v235, 0.0
  %vm268 = vcmp.gt.f32.partialorder %v236, 0.0
  %vm269 = vcmp.gt.f32.partialorder %v237, 0.0
  %vm270 = vcmp.gt.f32.partialorder %v238, 0.0
  %vm271 = vcmp.gt.f32.partialorder %v239, 0.0
  %v272 = vsel %vm264, %v232, %v256
  %v273 = vsel %vm265, %v233, %v257
  %v274 = vsel %vm266, %v234, %v258
  %v275 = vsel %vm267, %v235, %v259
  %v276 = vsel %vm268, %v236, %v260
  %v277 = vsel %vm269, %v237, %v261
  %v278 = vsel %vm270, %v238, %v262
  %v279 = vsel %vm271, %v239, %v263
  %v280 = vld [vmem:[%s5] sm:$0xff]
  %v281 = vld [vmem:[%s5 + $0x8] sm:$0xff]
  %v282 = vld [vmem:[%s5 + $0x10] sm:$0xff]
  %v283 = vld [vmem:[%s5 + $0x18] sm:$0xff]
  %v284 = vld [vmem:[%s5 + $0x20] sm:$0xff]
  %v285 = vld [vmem:[%s5 + $0x28] sm:$0xff]
  %v286 = vld [vmem:[%s5 + $0x30] sm:$0xff]
  %v287 = vld [vmem:[%s5 + $0x38] sm:$0xff]
  %v288 = vld [vmem:[%s5 + $0x40] sm:$0xff]
  %v289 = vld [vmem:[%s5 + $0x48] sm:$0xff]
  %v290 = vld [vmem:[%s5 + $0x50] sm:$0xff]
  %v291 = vld [vmem:[%s5 + $0x58] sm:$0xff]
  %v292 = vld [vmem:[%s5 + $0x60] sm:$0xff]
  %v293 = vld [vmem:[%s5 + $0x68] sm:$0xff]
  %v294 = vld [vmem:[%s5 + $0x70] sm:$0xff]
  %v295 = vld [vmem:[%s5 + $0x78] sm:$0xff]
  %v296 = vld [vmem:[%s5 + $0x80] sm:$0xff]
  %v297 = vld [vmem:[%s5 + $0x88] sm:$0xff]
  %v298 = vld [vmem:[%s5 + $0x90] sm:$0xff]
  %v299 = vld [vmem:[%s5 + $0x98] sm:$0xff]
  %v300 = vld [vmem:[%s5 + $0xa0] sm:$0xff]
  %v301 = vld [vmem:[%s5 + $0xa8] sm:$0xff]
  %v302 = vld [vmem:[%s5 + $0xb0] sm:$0xff]
  %v303 = vld [vmem:[%s5 + $0xb8] sm:$0xff]
  %v304 = vld [vmem:[%s5 + $0xc0] sm:$0xff]
  %v305 = vld [vmem:[%s5 + $0xc8] sm:$0xff]
  %v306 = vld [vmem:[%s5 + $0xd0] sm:$0xff]
  %v307 = vld [vmem:[%s5 + $0xd8] sm:$0xff]
  %v308 = vld [vmem:[%s5 + $0xe0] sm:$0xff]
  %v309 = vld [vmem:[%s5 + $0xe8] sm:$0xff]
  %v310 = vld [vmem:[%s5 + $0xf0] sm:$0xff]
  %v311 = vld [vmem:[%s5 + $0xf8] sm:$0xff]
  %v312 = vld [vmem:[%s6] sm:$0x1]
  %v314 = vperm.slane %v312, 0
  %316 = vmatpush.msra.mxu0 %v295
  %317 = vmatpush.msra.mxu0 %v294
  %318 = vmatpush.msra.mxu0 %v293
  %319 = vmatpush.msra.mxu0 %v292
  %320 = vmatpush.msra.mxu0 %v291
  %321 = vmatpush.msra.mxu0 %v290
  %322 = vmatpush.msra.mxu0 %v289
  %323 = vmatpush.msra.mxu0 %v288
  %324 = vmatpush.msra.mxu0 %v287
  %325 = vmatpush.msra.mxu0 %v286
  %326 = vmatpush.msra.mxu0 %v285
  %327 = vmatpush.msra.mxu0 %v284
  %328 = vmatpush.msra.mxu0 %v283
  %329 = vmatpush.msra.mxu0 %v282
  %330 = vmatpush.msra.mxu0 %v281
  %331 = vmatpush.msra.mxu0 %v280
  %332 = vmatmul.f32.gmra.mxu0 %v272
  %v333 = vpop.f32.mrf.mxu0
  %v334 = vadd.f32 %v314, %v333
  %335 = vmatmul.f32.gmra.mxu0 %v274
  %v336 = vpop.f32.mrf.mxu0
  %v337 = vadd.f32 %v314, %v336
  %338 = vmatmul.f32.gmra.mxu0 %v276
  %v339 = vpop.f32.mrf.mxu0
  %v340 = vadd.f32 %v314, %v339
  %341 = vmatmul.f32.gmra.mxu0 %v278
  %v342 = vpop.f32.mrf.mxu0
  %v343 = vadd.f32 %v314, %v342
  %344 = vdwg.mxu0
  %345 = vmatpush.msra.mxu0 %v311
  %346 = vmatpush.msra.mxu0 %v310
  %347 = vmatpush.msra.mxu0 %v309
  %348 = vmatpush.msra.mxu0 %v308
  %349 = vmatpush.msra.mxu0 %v307
  %350 = vmatpush.msra.mxu0 %v306
  %351 = vmatpush.msra.mxu0 %v305
  %352 = vmatpush.msra.mxu0 %v304
  %353 = vmatpush.msra.mxu0 %v303
  %354 = vmatpush.msra.mxu0 %v302
  %355 = vmatpush.msra.mxu0 %v301
  %356 = vmatpush.msra.mxu0 %v300
  %357 = vmatpush.msra.mxu0 %v299
  %358 = vmatpush.msra.mxu0 %v298
  %359 = vmatpush.msra.mxu0 %v297
  %360 = vmatpush.msra.mxu0 %v296
  %361 = vmatmul.f32.gmra.mxu0 %v273
  %v362 = vpop.f32.mrf.mxu0
  %v363 = vadd.f32 %v334, %v362
  %364 = vmatmul.f32.gmra.mxu0 %v275
  %v365 = vpop.f32.mrf.mxu0
  %v366 = vadd.f32 %v337, %v365
  %367 = vmatmul.f32.gmra.mxu0 %v277
  %v368 = vpop.f32.mrf.mxu0
  %v369 = vadd.f32 %v340, %v368
  %370 = vmatmul.f32.gmra.mxu0 %v279
  %v371 = vpop.f32.mrf.mxu0
  %v372 = vadd.f32 %v343, %v371
  %373 = vdwg.mxu0
  %v374 = vmul.f32 %v363, 1.442695
  %v375 = vpow.pop %v374
  %v376 = vmul.f32 %v366, 1.442695
  %v377 = vpow.pop %v376
  %v378 = vmul.f32 %v369, 1.442695
  %v379 = vpow.pop %v378
  %v380 = vmul.f32 %v372, 1.442695
  %v381 = vpow.pop %v380
  %v382 = vsub.f32 %v375, 1.0
  %v383 = vsub.f32 %v377, 1.0
  %v384 = vsub.f32 %v379, 1.0
  %v385 = vsub.f32 %v381, 1.0
  %vm386 = vcmp.gt.f32.partialorder %v363, 0.0
  %vm387 = vcmp.gt.f32.partialorder %v366, 0.0
  %vm388 = vcmp.gt.f32.partialorder %v369, 0.0
  %vm389 = vcmp.gt.f32.partialorder %v372, 0.0
  %v390 = vsel %vm386, %v363, %v382
  %v391 = vsel %vm387, %v366, %v383
  %v392 = vsel %vm388, %v369, %v384
  %v393 = vsel %vm389, %v372, %v385
  %v394 = vld [vmem:[%s7] sm:$0xff]
  %v395 = vld [vmem:[%s7 + $0x8] sm:$0xff]
  %v396 = vld [vmem:[%s7 + $0x10] sm:$0xff]
  %v397 = vld [vmem:[%s7 + $0x18] sm:$0xff]
  %v398 = vld [vmem:[%s7 + $0x20] sm:$0xff]
  %v399 = vld [vmem:[%s7 + $0x28] sm:$0xff]
  %v400 = vld [vmem:[%s7 + $0x30] sm:$0xff]
  %v401 = vld [vmem:[%s7 + $0x38] sm:$0xff]
  %v402 = vld [vmem:[%s7 + $0x40] sm:$0xff]
  %v403 = vld [vmem:[%s7 + $0x48] sm:$0xff]
  %v404 = vld [vmem:[%s7 + $0x50] sm:$0xff]
  %v405 = vld [vmem:[%s7 + $0x58] sm:$0xff]
  %v406 = vld [vmem:[%s7 + $0x60] sm:$0xff]
  %v407 = vld [vmem:[%s7 + $0x68] sm:$0xff]
  %v408 = vld [vmem:[%s7 + $0x70] sm:$0xff]
  %v409 = vld [vmem:[%s7 + $0x78] sm:$0xff]
  %v410 = vld [vmem:[%s8] sm:$0x1]
  %v412 = vperm.slane %v410, 0
  %414 = vmatpush.msra.mxu0 %v409
  %415 = vmatpush.msra.mxu0 %v408
  %416 = vmatpush.msra.mxu0 %v407
  %417 = vmatpush.msra.mxu0 %v406
  %418 = vmatpush.msra.mxu0 %v405
  %419 = vmatpush.msra.mxu0 %v404
  %420 = vmatpush.msra.mxu0 %v403
  %421 = vmatpush.msra.mxu0 %v402
  %422 = vmatpush.msra.mxu0 %v401
  %423 = vmatpush.msra.mxu0 %v400
  %424 = vmatpush.msra.mxu0 %v399
  %425 = vmatpush.msra.mxu0 %v398
  %426 = vmatpush.msra.mxu0 %v397
  %427 = vmatpush.msra.mxu0 %v396
  %428 = vmatpush.msra.mxu0 %v395
  %429 = vmatpush.msra.mxu0 %v394
  %430 = vmatmul.f32.gmra.mxu0 %v390
  %v431 = vpop.f32.mrf.mxu0
  %v432 = vadd.f32 %v412, %v431
  %433 = vmatmul.f32.gmra.mxu0 %v391
  %v434 = vpop.f32.mrf.mxu0
  %v435 = vadd.f32 %v412, %v434
  %436 = vmatmul.f32.gmra.mxu0 %v392
  %v437 = vpop.f32.mrf.mxu0
  %v438 = vadd.f32 %v412, %v437
  %439 = vmatmul.f32.gmra.mxu0 %v393
  %v440 = vpop.f32.mrf.mxu0
  %v441 = vadd.f32 %v412, %v440
  %442 = vdwg.mxu0
  %v443 = vmul.f32 %v432, 1.442695
  %v444 = vpow.pop %v443
  %v445 = vmul.f32 %v435, 1.442695
  %v446 = vpow.pop %v445
  %v447 = vmul.f32 %v438, 1.442695
  %v448 = vpow.pop %v447
  %v449 = vmul.f32 %v441, 1.442695
  %v450 = vpow.pop %v449
  %v451 = vsub.f32 %v444, 1.0
  %v452 = vsub.f32 %v446, 1.0
  %v453 = vsub.f32 %v448, 1.0
  %v454 = vsub.f32 %v450, 1.0
  %vm455 = vcmp.gt.f32.partialorder %v432, 0.0
  %vm456 = vcmp.gt.f32.partialorder %v435, 0.0
  %vm457 = vcmp.gt.f32.partialorder %v438, 0.0
  %vm458 = vcmp.gt.f32.partialorder %v441, 0.0
  %v459 = vsel %vm455, %v432, %v451
  %v460 = vsel %vm456, %v435, %v452
  %v461 = vsel %vm457, %v438, %v453
  %v462 = vsel %vm458, %v441, %v454
  %v463 = vld [vmem:[%s9] sm:$0xff]
  %v464 = vld [vmem:[%s9 + $0x8] sm:$0xff]
  %v465 = vld [vmem:[%s9 + $0x10] sm:$0xff]
  %v466 = vld [vmem:[%s9 + $0x18] sm:$0xff]
  %v467 = vld [vmem:[%s9 + $0x20] sm:$0xff]
  %v468 = vld [vmem:[%s9 + $0x28] sm:$0xff]
  %v469 = vld [vmem:[%s9 + $0x30] sm:$0xff]
  %v470 = vld [vmem:[%s9 + $0x38] sm:$0xff]
  %v471 = vld [vmem:[%s9 + $0x40] sm:$0xff]
  %v472 = vld [vmem:[%s9 + $0x48] sm:$0xff]
  %v473 = vld [vmem:[%s10] sm:$0x1]
  %v475 = vperm.slane %v473, 0
  %vm477 = vcmask 654336
  %v479 = vsel %vm477, %v459, 0
  %v482 = vsel %vm477, %v460, 0
  %v485 = vsel %vm477, %v461, 0
  %v488 = vsel %vm477, %v462, 0
  %490 = vmatpush.msra.mxu0 0.0
  %491 = vmatpush.msra.mxu0 0.0
  %492 = vmatpush.msra.mxu0 0.0
  %493 = vmatpush.msra.mxu0 0.0
  %494 = vmatpush.msra.mxu0 0.0
  %495 = vmatpush.msra.mxu0 0.0
  %496 = vmatpush.msra.mxu0 %v472
  %497 = vmatpush.msra.mxu0 %v471
  %498 = vmatpush.msra.mxu0 %v470
  %499 = vmatpush.msra.mxu0 %v469
  %500 = vmatpush.msra.mxu0 %v468
  %501 = vmatpush.msra.mxu0 %v467
  %502 = vmatpush.msra.mxu0 %v466
  %503 = vmatpush.msra.mxu0 %v465
  %504 = vmatpush.msra.mxu0 %v464
  %505 = vmatpush.msra.mxu0 %v463
  %506 = vmatmul.f32.gmra.mxu0 %v479
  %v507 = vpop.f32.mrf.mxu0
  %v508 = vadd.f32 %v475, %v507
  %509 = vmatmul.f32.gmra.mxu0 %v482
  %v510 = vpop.f32.mrf.mxu0
  %v511 = vadd.f32 %v475, %v510
  %512 = vmatmul.f32.gmra.mxu0 %v485
  %v513 = vpop.f32.mrf.mxu0
  %v514 = vadd.f32 %v475, %v513
  %515 = vmatmul.f32.gmra.mxu0 %v488
  %v516 = vpop.f32.mrf.mxu0
  %v517 = vadd.f32 %v475, %v516
  %518 = vdwg.mxu0
  %v519 = vsub.f32 0.0, %v508
  %v520 = vsub.f32 0.0, %v511
  %v521 = vsub.f32 0.0, %v514
  %v522 = vsub.f32 0.0, %v517
  %v523 = vmul.f32 %v519, 1.442695
  %v524 = vpow.pop %v523
  %v525 = vmul.f32 %v520, 1.442695
  %v526 = vpow.pop %v525
  %v527 = vmul.f32 %v521, 1.442695
  %v528 = vpow.pop %v527
  %v529 = vmul.f32 %v522, 1.442695
  %v530 = vpow.pop %v529
  %v531 = vadd.f32 %v524, 1.0
  %v532 = vadd.f32 %v526, 1.0
  %v533 = vadd.f32 %v528, 1.0
  %v534 = vadd.f32 %v530, 1.0
  %v535 = vrcp.pop %v531
  %v536 = vmul.f32 %v531, %v535
  %v537 = vsub.f32 1.0, %v536
  %v538 = vmul.f32 %v535, %v537
  %v539 = vadd.f32 %v535, %v538
  %vm540 = vweird.f32 %v531
  %vm541 = vweird.f32 %v535
  %vm542 = vmor %vm540, %vm541
  %v543 = vsel %vm542, %v535, %v539
  %v544 = vand.u32 2147483647, %v531
  %vm545 = vcmp.eq.f32.partialorder %v544, 8.507059e+37
  %v546 = vand.u32 %v531, 2147483648
  %v547 = vor.u32 1.1754944e-38, %v546
  %v548 = vsel %vm545, %v547, %v543
  %v549 = vmul.f32 1.0, %v548
  %v550 = vrcp.pop %v532
  %v551 = vmul.f32 %v532, %v550
  %v552 = vsub.f32 1.0, %v551
  %v553 = vmul.f32 %v550, %v552
  %v554 = vadd.f32 %v550, %v553
  %vm555 = vweird.f32 %v532
  %vm556 = vweird.f32 %v550
  %vm557 = vmor %vm555, %vm556
  %v558 = vsel %vm557, %v550, %v554
  %v559 = vand.u32 2147483647, %v532
  %vm560 = vcmp.eq.f32.partialorder %v559, 8.507059e+37
  %v561 = vand.u32 %v532, 2147483648
  %v562 = vor.u32 1.1754944e-38, %v561
  %v563 = vsel %vm560, %v562, %v558
  %v564 = vmul.f32 1.0, %v563
  %v565 = vrcp.pop %v533
  %v566 = vmul.f32 %v533, %v565
  %v567 = vsub.f32 1.0, %v566
  %v568 = vmul.f32 %v565, %v567
  %v569 = vadd.f32 %v565, %v568
  %vm570 = vweird.f32 %v533
  %vm571 = vweird.f32 %v565
  %vm572 = vmor %vm570, %vm571
  %v573 = vsel %vm572, %v565, %v569
  %v574 = vand.u32 2147483647, %v533
  %vm575 = vcmp.eq.f32.partialorder %v574, 8.507059e+37
  %v576 = vand.u32 %v533, 2147483648
  %v577 = vor.u32 1.1754944e-38, %v576
  %v578 = vsel %vm575, %v577, %v573
  %v579 = vmul.f32 1.0, %v578
  %v580 = vrcp.pop %v534
  %v581 = vmul.f32 %v534, %v580
  %v582 = vsub.f32 1.0, %v581
  %v583 = vmul.f32 %v580, %v582
  %v584 = vadd.f32 %v580, %v583
  %vm585 = vweird.f32 %v534
  %vm586 = vweird.f32 %v580
  %vm587 = vmor %vm585, %vm586
  %v588 = vsel %vm587, %v580, %v584
  %v589 = vand.u32 2147483647, %v534
  %vm590 = vcmp.eq.f32.partialorder %v589, 8.507059e+37
  %v591 = vand.u32 %v534, 2147483648
  %v592 = vor.u32 1.1754944e-38, %v591
  %v593 = vsel %vm590, %v592, %v588
  %v594 = vmul.f32 1.0, %v593
  %vm595 = vcmask 64512
  %596 = vst.msk [vmem:[%s11] sm:$0xff] %vm595, %v549
  %597 = vst.msk [vmem:[%s11 + $0x8] sm:$0xff] %vm595, %v564
  %598 = vst.msk [vmem:[%s11 + $0x10] sm:$0xff] %vm595, %v579
  %599 = vst.msk [vmem:[%s11 + $0x18] sm:$0xff] %vm595, %v594
  // Predicated region
  $region46: #{linear_model_forward.1} parent=0 // pred_check
    _
  $region47: #{linear_model_forward.1} parent=0 // pred_check_branch
    %601 = sbr.rel (0) target = $region49
  $region48: #{linear_model_forward.1} parent=0 // pred_region
    _
  $region49: #{linear_model_forward.1} parent=0 // pred_fallthru
    _
  // Predicated region
  $region50: #{linear_model_forward.1} parent=0 // pred_check
    _
  $region51: #{linear_model_forward.1} parent=0 // pred_check_branch
    %603 = sbr.rel (0) target = $region53
  $region52: #{linear_model_forward.1} parent=0 // pred_region
    _
  $region53: #{linear_model_forward.1} parent=0 // pred_fallthru
    _

</llo_original>
